<compile_context>
chip_gen: v7x
topology: tpu7x:2x2x1
jax: 0.10.0
libtpu: 0.0.40
codegen_flags: <defaults>
</compile_context>

<pallas_src>
import jax
import jax.numpy as jnp
from jax.experimental import pallas as pl
from jax.experimental.pallas import tpu as pltpu


def linear_kernel(x_ref, w_ref, b_ref, o_ref):
    # x_ref: (tR, pack*F) VMEM   -- row r holds batch rows pack*r .. pack*r+pack-1
    # w_ref: (1, F)        VMEM  -- resident weight row
    # b_ref: (1,)          SMEM  -- scalar bias
    # o_ref: (tR, pack)    VMEM
    pack = o_ref.shape[-1]
    F = w_ref.shape[-1]
    w = w_ref[...].astype(jnp.float32)          # (1, F), broadcasts over tR sublanes
    bias = b_ref[0]
    for g in range(pack):                       # static unroll (pack = 128 // F, e.g. 4)
        xg = x_ref[:, g * F:(g + 1) * F].astype(jnp.float32)   # static lane slice, (tR, F)
        yg = jnp.sum(xg * w, axis=-1, keepdims=True) + bias    # VPU mul + F-wide XLU reduce
        o_ref[:, g:g + 1] = yg.astype(o_ref.dtype)             # no sublane->lane transpose


def _round_up(n, m):
    return ((n + m - 1) // m) * m


MAX_BLOCK_B = 16384  # batch rows per grid step (amortizes ~0.35us/step overhead)


def net_forward(x, w, b, *, max_block_b=MAX_BLOCK_B):
    """x: (B, F); w: (1, F) (PyTorch nn.Linear layout); b: (1,). Returns (B, 1)."""
    B, F = x.shape
    assert w.shape == (1, F) and b.shape == (1,)

    # How many batch rows share one 128-lane row (lane packing).
    if F < 128 and 128 % F == 0:
        pack = min(128 // F, 16)          # cap the static unroll for tiny F
    else:
        pack = 1
    lanes = pack * F

    # Keep double-buffered x tiles well under every generation's scoped VMEM.
    itemsize = jnp.dtype(x.dtype).itemsize
    vmem_budget = 4 * 1024 * 1024         # bytes per input buffer (x2 double-buffered)
    cap = max(128, (vmem_budget // (F * itemsize)) // 128 * 128)
    max_block_b = min(max_block_b, cap)

    # Pad B so every block is lane/sublane aligned (no masked tail, no odd block).
    B_pad = _round_up(B, 128)
    if B_pad <= max_block_b:
        block_b = B_pad
    else:
        block_b = max_block_b
        B_pad = _round_up(B_pad, block_b)
    num_steps = B_pad // block_b
    tR = block_b // pack

    x_p = x if B_pad == B else jnp.pad(x, ((0, B_pad - B), (0, 0)))
    x_r = x_p.reshape(B_pad // pack, lanes)   # row-major regroup: no element reorder

    out = pl.pallas_call(
        linear_kernel,
        out_shape=jax.ShapeDtypeStruct((B_pad // pack, pack), x.dtype),
        grid=(num_steps,),
        in_specs=[
            pl.BlockSpec((tR, lanes), lambda i: (i, 0)),          # stream big batch tiles
            pl.BlockSpec((1, F), lambda i: (0, 0)),               # weight: resident
            pl.BlockSpec(memory_space=pltpu.MemorySpace.SMEM),    # bias scalar in SMEM
        ],
        out_specs=pl.BlockSpec((tR, pack), lambda i: (i, 0)),
        compiler_params=pltpu.CompilerParams(
            dimension_semantics=("parallel",) if num_steps > 1 else ("arbitrary",),
        ),
    )(x_r, w, b)

    y = out.reshape(B_pad, 1)
    return y if B_pad == B else y[:B]


if __name__ == "__main__":
    key = jax.random.PRNGKey(0)
    k_x, k_w, k_b = jax.random.split(key, 3)

    batch, feature_num = 256, 32

    # nn.init.normal_(param, mean=0, std=0.01); weight layout matches nn.Linear (out=1, in=F).
    w = (0.01 * jax.random.normal(k_w, (1, feature_num))).astype(jnp.float32)
    b = (0.01 * jax.random.normal(k_b, (1,))).astype(jnp.float32)
    x = jax.random.normal(k_x, (batch, feature_num), dtype=jnp.float32)

    # B=256 -> one grid step, one dense (64, 128) f32 tile.
    out = jax.block_until_ready(net_forward(x, w, b))

    ref = jnp.dot(x, w.T, precision=jax.lax.Precision.HIGHEST) + b
    assert out.shape == (batch, 1)
    assert jnp.allclose(out, ref, atol=1e-5), "mismatch vs reference"
    print("KERNEL_OK")
</pallas_src>

<mosaic_0001>
module attributes {stable_mosaic.version = 11 : i64} {
  func.func @linear_kernel(%arg0: i32, %arg1: memref<64x128xf32, #tpu.memory_space<vmem>>, %arg2: memref<1x32xf32, #tpu.memory_space<vmem>>, %arg3: memref<1xf32, #tpu.memory_space<smem>>, %arg4: memref<64x4xf32, #tpu.memory_space<vmem>>) attributes {dimension_semantics = [#tpu.dimension_semantics<arbitrary>], iteration_bounds = array<i64: 1>, scalar_prefetch = 0 : i64, scratch_operands = 0 : i64, tpu.core_type = #tpu.core_type<tc>, window_params = [{transform_indices = @transform_0, window_bounds = array<i64: 64, 128>}, {pipeline_mode = #tpu.pipeline_mode<synchronous>, transform_indices = @transform_1, window_bounds = array<i64: 1, 32>}, {transform_indices = @transform_2, window_bounds = array<i64: 1>}, {transform_indices = @transform_3, window_bounds = array<i64: 64, 4>}]} {
    %c0 = arith.constant 0 : index
    %c0_0 = arith.constant 0 : index
    %0 = vector.load %arg2[%c0, %c0_0] : memref<1x32xf32, #tpu.memory_space<vmem>>, vector<1x32xf32>
    %c0_1 = arith.constant 0 : index
    %1 = memref.load %arg3[%c0_1] : memref<1xf32, #tpu.memory_space<smem>>
    %c0_2 = arith.constant 0 : index
    %c0_3 = arith.constant 0 : index
    %2 = vector.load %arg1[%c0_2, %c0_3] : memref<64x128xf32, #tpu.memory_space<vmem>>, vector<64x32xf32>
    %3 = vector.broadcast %0 : vector<1x32xf32> to vector<64x32xf32>
    %4 = arith.mulf %2, %3 : vector<64x32xf32>
    %cst = arith.constant dense<0.000000e+00> : vector<64xf32>
    %5 = vector.multi_reduction <add>, %4, %cst [1] : vector<64x32xf32> to vector<64xf32>
    %6 = vector.shape_cast %5 : vector<64xf32> to vector<64x1xf32>
    %7 = vector.broadcast %1 : f32 to vector<64x1xf32>
    %8 = arith.addf %6, %7 : vector<64x1xf32>
    %c0_4 = arith.constant 0 : index
    %c0_5 = arith.constant 0 : index
    %9 = vector.load %arg4[%c0_4, %c0_5] : memref<64x4xf32, #tpu.memory_space<vmem>>, vector<64x1xf32>
    tpu.vector_store %arg4[%c0_4, %c0_5], %8 {strides = array<i32>} : memref<64x4xf32, #tpu.memory_space<vmem>>, vector<64x1xf32>,
    %c0_6 = arith.constant 0 : index
    %c32 = arith.constant 32 : index
    %10 = vector.load %arg1[%c0_6, %c32] : memref<64x128xf32, #tpu.memory_space<vmem>>, vector<64x32xf32>
    %11 = vector.broadcast %0 : vector<1x32xf32> to vector<64x32xf32>
    %12 = arith.mulf %10, %11 : vector<64x32xf32>
    %cst_7 = arith.constant dense<0.000000e+00> : vector<64xf32>
    %13 = vector.multi_reduction <add>, %12, %cst_7 [1] : vector<64x32xf32> to vector<64xf32>
    %14 = vector.shape_cast %13 : vector<64xf32> to vector<64x1xf32>
    %15 = vector.broadcast %1 : f32 to vector<64x1xf32>
    %16 = arith.addf %14, %15 : vector<64x1xf32>
    %c0_8 = arith.constant 0 : index
    %c1 = arith.constant 1 : index
    %17 = vector.load %arg4[%c0_8, %c1] : memref<64x4xf32, #tpu.memory_space<vmem>>, vector<64x1xf32>
    tpu.vector_store %arg4[%c0_8, %c1], %16 {strides = array<i32>} : memref<64x4xf32, #tpu.memory_space<vmem>>, vector<64x1xf32>,
    %c0_9 = arith.constant 0 : index
    %c64 = arith.constant 64 : index
    %18 = vector.load %arg1[%c0_9, %c64] : memref<64x128xf32, #tpu.memory_space<vmem>>, vector<64x32xf32>
    %19 = vector.broadcast %0 : vector<1x32xf32> to vector<64x32xf32>
    %20 = arith.mulf %18, %19 : vector<64x32xf32>
    %cst_10 = arith.constant dense<0.000000e+00> : vector<64xf32>
    %21 = vector.multi_reduction <add>, %20, %cst_10 [1] : vector<64x32xf32> to vector<64xf32>
    %22 = vector.shape_cast %21 : vector<64xf32> to vector<64x1xf32>
    %23 = vector.broadcast %1 : f32 to vector<64x1xf32>
    %24 = arith.addf %22, %23 : vector<64x1xf32>
    %c0_11 = arith.constant 0 : index
    %c2 = arith.constant 2 : index
    %25 = vector.load %arg4[%c0_11, %c2] : memref<64x4xf32, #tpu.memory_space<vmem>>, vector<64x1xf32>
    tpu.vector_store %arg4[%c0_11, %c2], %24 {strides = array<i32>} : memref<64x4xf32, #tpu.memory_space<vmem>>, vector<64x1xf32>,
    %c0_12 = arith.constant 0 : index
    %c96 = arith.constant 96 : index
    %26 = vector.load %arg1[%c0_12, %c96] : memref<64x128xf32, #tpu.memory_space<vmem>>, vector<64x32xf32>
    %27 = vector.broadcast %0 : vector<1x32xf32> to vector<64x32xf32>
    %28 = arith.mulf %26, %27 : vector<64x32xf32>
    %cst_13 = arith.constant dense<0.000000e+00> : vector<64xf32>
    %29 = vector.multi_reduction <add>, %28, %cst_13 [1] : vector<64x32xf32> to vector<64xf32>
    %30 = vector.shape_cast %29 : vector<64xf32> to vector<64x1xf32>
    %31 = vector.broadcast %1 : f32 to vector<64x1xf32>
    %32 = arith.addf %30, %31 : vector<64x1xf32>
    %c0_14 = arith.constant 0 : index
    %c3 = arith.constant 3 : index
    %33 = vector.load %arg4[%c0_14, %c3] : memref<64x4xf32, #tpu.memory_space<vmem>>, vector<64x1xf32>
    tpu.vector_store %arg4[%c0_14, %c3], %32 {strides = array<i32>} : memref<64x4xf32, #tpu.memory_space<vmem>>, vector<64x1xf32>,
    return
  }
  func.func @transform_0(%arg0: i32) -> (i32, i32) {
    %c0_i32 = arith.constant 0 : i32
    %c0_i32_0 = arith.constant 0 : i32
    return %arg0, %c0_i32 : i32, i32
  }
  func.func @transform_1(%arg0: i32) -> (i32, i32) {
    %c0_i32 = arith.constant 0 : i32
    %c0_i32_0 = arith.constant 0 : i32
    %c0_i32_1 = arith.constant 0 : i32
    return %c0_i32, %c0_i32_0 : i32, i32
  }
  func.func @transform_2(%arg0: i32) -> i32 {
    %c0_i32 = arith.constant 0 : i32
    %c0_i32_0 = arith.constant 0 : i32
    return %c0_i32 : i32
  }
  func.func @transform_3(%arg0: i32) -> (i32, i32) {
    %c0_i32 = arith.constant 0 : i32
    %c0_i32_0 = arith.constant 0 : i32
    return %arg0, %c0_i32 : i32, i32
  }
}

</mosaic_0001>

<llo_original>
// kernel: tpu_custom_call.1
$region0: #{tpu_custom_call.1}
  #allocation0 [shape = 'u32[]', space=smem, size = 0x4, offset = 0x4, fixed_abs, tag = 'smem constant byte address 0x4 - core index']
  #allocation1 [shape = 'u32[144,128]{1,0:T(1,128)}', space=vmem, size = 0x12000, scoped, tag = 'internal scratch']
  #allocation2 [shape = 'f32[1]{0:T(128)S(6)}', space=smem, size = 0x200, scoped, tag = 'scoped memory for tpu_custom_call.1']
  %s0 = inlined_call_operand.hbm [shape: f32[64,128], index: 0, kind: input, shape index: {}]
  %s1 = inlined_call_operand.vmem [shape: f32[1,32], index: 1, kind: input, shape index: {}]
  %s2 = inlined_call_operand.<no memory space> [shape: f32[1], index: 2, kind: input, shape index: {}]
  %s3 = inlined_call_operand.vmem [shape: f32[64,4], index: 3, kind: output, shape index: {}]
  %s4 = sld [smem:[#allocation0]]
  $region26: #{tpu_custom_call.1} parent=0
    _
  %s6 = ssub.s32 1, %s4
  %s7 = scalar_select 0, %s6, %s4
  %8 = sst [smem:[#allocation2]] %s2
  $region1: #{tpu_custom_call.1} parent=0
    #allocation3 [shape = 'u8[32768]{0}', space=vmem, size = 0x8000, scoped, tag = 'input window, operand 0, single buffered']
    #allocation4 [shape = 's32[1]{0}', space=sflag, size = 0x4, scoped, tag = 'scoped memory for tpu_custom_call.1']
    %9 = vsyncpa [#allocation4], 0
    // Predicated region
    $region2: #{tpu_custom_call.1} parent=1 // pred_check
      _
    $region3: #{tpu_custom_call.1} parent=1 // pred_check_branch
      %11 = sbr.rel (0) target = $region5
    $region4: #{tpu_custom_call.1} parent=1 // pred_region
      %s13 = ssub.s32 1024, 1024
      %14 = vsyncadd [#allocation4], %s13
      %s15 = sshll.u32 [#allocation3], 4
      %s16 = int_to_ptr.vmem [resolvable:$true] %s15
      %21 = dma.hbm_to_vmem [thread:$0]  %s0, 1024, %s16, [#allocation4], 128, 128, 8
    $region5: #{tpu_custom_call.1} parent=1 // pred_fallthru
      _
    // Predicated region
    $region6: #{tpu_custom_call.1} parent=1 // pred_check
      _
    $region7: #{tpu_custom_call.1} parent=1 // pred_check_branch
      %23 = sbr.rel (0) target = $region9
    $region8: #{tpu_custom_call.1} parent=1 // pred_region
      _
    $region9: #{tpu_custom_call.1} parent=1 // pred_fallthru
      _
    // Predicated region
    $region10: #{tpu_custom_call.1} parent=1 // pred_check
      _
    $region11: #{tpu_custom_call.1} parent=1 // pred_check_branch
      %25 = sbr.rel (0) target = $region13
    $region12: #{tpu_custom_call.1} parent=1 // pred_region
      _
    $region13: #{tpu_custom_call.1} parent=1 // pred_fallthru
      _
    // Predicated region
    $region14: #{tpu_custom_call.1} parent=1 // pred_check
      _
    $region15: #{tpu_custom_call.1} parent=1 // pred_check_branch
      %27 = sbr.rel (0) target = $region17
    $region16: #{tpu_custom_call.1} parent=1 // pred_region
      %28 = dma.done [#allocation4], 1024
    $region17: #{tpu_custom_call.1} parent=1 // pred_fallthru
      _
    %v29 = vld [vmem:[%s1] sm:$0x1]
    %s30 = sld [smem:[#allocation2]]
    %v31 = vld [vmem:[#allocation3] sm:$0xff]
    %v32 = vld [vmem:[#allocation3 + $0x8] sm:$0xff]
    %v33 = vld [vmem:[#allocation3 + $0x10] sm:$0xff]
    %v34 = vld [vmem:[#allocation3 + $0x18] sm:$0xff]
    %v35 = vld [vmem:[#allocation3 + $0x20] sm:$0xff]
    %v36 = vld [vmem:[#allocation3 + $0x28] sm:$0xff]
    %v37 = vld [vmem:[#allocation3 + $0x30] sm:$0xff]
    %v38 = vld [vmem:[#allocation3 + $0x38] sm:$0xff]
    %v40 = vlaneseq
    %v41 = vshrl.u32 %v40, 7
    %v42 = vsub.s32 0, %v41
    %v43 = vrot.slane %v29, %v42
    %v45 = vmul.f32 %v31, %v43
    %v46 = vmul.f32 %v32, %v43
    %v47 = vmul.f32 %v33, %v43
    %v48 = vmul.f32 %v34, %v43
    %v49 = vmul.f32 %v35, %v43
    %v50 = vmul.f32 %v36, %v43
    %v51 = vmul.f32 %v37, %v43
    %v52 = vmul.f32 %v38, %v43
    %vm53 = vcmask 261120
    %v54 = vsel %vm53, %v45, 0.0
    %55 = vadd.xlane.f32.xlu0 %v54
    %v56 = vpop.xlane.xlu0 %55
    %v57 = vsel %vm53, %v46, 0.0
    %58 = vadd.xlane.f32.xlu0 %v57
    %v59 = vpop.xlane.xlu0 %58
    %v60 = vsel %vm53, %v47, 0.0
    %61 = vadd.xlane.f32.xlu0 %v60
    %v62 = vpop.xlane.xlu0 %61
    %v63 = vsel %vm53, %v48, 0.0
    %64 = vadd.xlane.f32.xlu0 %v63
    %v65 = vpop.xlane.xlu0 %64
    %v66 = vsel %vm53, %v49, 0.0
    %67 = vadd.xlane.f32.xlu0 %v66
    %v68 = vpop.xlane.xlu0 %67
    %v69 = vsel %vm53, %v50, 0.0
    %70 = vadd.xlane.f32.xlu0 %v69
    %v71 = vpop.xlane.xlu0 %70
    %v72 = vsel %vm53, %v51, 0.0
    %73 = vadd.xlane.f32.xlu0 %v72
    %v74 = vpop.xlane.xlu0 %73
    %v75 = vsel %vm53, %v52, 0.0
    %76 = vadd.xlane.f32.xlu0 %v75
    %v77 = vpop.xlane.xlu0 %76
    %v78 = vstv %s30
    %v79 = vadd.f32 %v56, %v78
    %v80 = vadd.f32 %v59, %v78
    %v81 = vadd.f32 %v62, %v78
    %v82 = vadd.f32 %v65, %v78
    %v83 = vadd.f32 %v68, %v78
    %v84 = vadd.f32 %v71, %v78
    %v85 = vadd.f32 %v74, %v78
    %v86 = vadd.f32 %v77, %v78
    %vm87 = vcmask 7168
    %88 = vst.msk [vmem:[%s3] sm:$0xff] %vm87, %v79
    %89 = vst.msk [vmem:[%s3 + $0x8] sm:$0xff] %vm87, %v80
    %90 = vst.msk [vmem:[%s3 + $0x10] sm:$0xff] %vm87, %v81
    %91 = vst.msk [vmem:[%s3 + $0x18] sm:$0xff] %vm87, %v82
    %92 = vst.msk [vmem:[%s3 + $0x20] sm:$0xff] %vm87, %v83
    %93 = vst.msk [vmem:[%s3 + $0x28] sm:$0xff] %vm87, %v84
    %94 = vst.msk [vmem:[%s3 + $0x30] sm:$0xff] %vm87, %v85
    %95 = vst.msk [vmem:[%s3 + $0x38] sm:$0xff] %vm87, %v86
    %v96 = vld [vmem:[#allocation3] sm:$0xff]
    %v97 = vld [vmem:[#allocation3 + $0x8] sm:$0xff]
    %v98 = vld [vmem:[#allocation3 + $0x10] sm:$0xff]
    %v99 = vld [vmem:[#allocation3 + $0x18] sm:$0xff]
    %v100 = vld [vmem:[#allocation3 + $0x20] sm:$0xff]
    %v101 = vld [vmem:[#allocation3 + $0x28] sm:$0xff]
    %v102 = vld [vmem:[#allocation3 + $0x30] sm:$0xff]
    %v103 = vld [vmem:[#allocation3 + $0x38] sm:$0xff]
    %104 = vrot.lane.b32.xlu0 %v43, 32
    %v105 = vpop.permute.xlu0 %104
    %v107 = vmul.f32 %v96, %v105
    %v108 = vmul.f32 %v97, %v105
    %v109 = vmul.f32 %v98, %v105
    %v110 = vmul.f32 %v99, %v105
    %v111 = vmul.f32 %v100, %v105
    %v112 = vmul.f32 %v101, %v105
    %v113 = vmul.f32 %v102, %v105
    %v114 = vmul.f32 %v103, %v105
    %123 = vrot.lane.b32.xlu0 %v107, 96
    %v124 = vpop.permute.xlu0 %123
    %125 = vrot.lane.b32.xlu0 %v108, 96
    %v126 = vpop.permute.xlu0 %125
    %127 = vrot.lane.b32.xlu0 %v109, 96
    %v128 = vpop.permute.xlu0 %127
    %129 = vrot.lane.b32.xlu0 %v110, 96
    %v130 = vpop.permute.xlu0 %129
    %131 = vrot.lane.b32.xlu0 %v111, 96
    %v132 = vpop.permute.xlu0 %131
    %133 = vrot.lane.b32.xlu0 %v112, 96
    %v134 = vpop.permute.xlu0 %133
    %135 = vrot.lane.b32.xlu0 %v113, 96
    %v136 = vpop.permute.xlu0 %135
    %137 = vrot.lane.b32.xlu0 %v114, 96
    %v138 = vpop.permute.xlu0 %137
    %v147 = vsel %vm53, %v124, 0.0
    %148 = vadd.xlane.f32.xlu0 %v147
    %v149 = vpop.xlane.xlu0 %148
    %v150 = vsel %vm53, %v126, 0.0
    %151 = vadd.xlane.f32.xlu0 %v150
    %v152 = vpop.xlane.xlu0 %151
    %v153 = vsel %vm53, %v128, 0.0
    %154 = vadd.xlane.f32.xlu0 %v153
    %v155 = vpop.xlane.xlu0 %154
    %v156 = vsel %vm53, %v130, 0.0
    %157 = vadd.xlane.f32.xlu0 %v156
    %v158 = vpop.xlane.xlu0 %157
    %v159 = vsel %vm53, %v132, 0.0
    %160 = vadd.xlane.f32.xlu0 %v159
    %v161 = vpop.xlane.xlu0 %160
    %v162 = vsel %vm53, %v134, 0.0
    %163 = vadd.xlane.f32.xlu0 %v162
    %v164 = vpop.xlane.xlu0 %163
    %v165 = vsel %vm53, %v136, 0.0
    %166 = vadd.xlane.f32.xlu0 %v165
    %v167 = vpop.xlane.xlu0 %166
    %v168 = vsel %vm53, %v138, 0.0
    %169 = vadd.xlane.f32.xlu0 %v168
    %v170 = vpop.xlane.xlu0 %169
    %v171 = vadd.f32 %v149, %v78
    %v172 = vadd.f32 %v152, %v78
    %v173 = vadd.f32 %v155, %v78
    %v174 = vadd.f32 %v158, %v78
    %v175 = vadd.f32 %v161, %v78
    %v176 = vadd.f32 %v164, %v78
    %v177 = vadd.f32 %v167, %v78
    %v178 = vadd.f32 %v170, %v78
    %vm179 = vcmask 15368
    %180 = vst.msk [vmem:[%s3] sm:$0xff] %vm179, %v171
    %181 = vst.msk [vmem:[%s3 + $0x8] sm:$0xff] %vm179, %v172
    %182 = vst.msk [vmem:[%s3 + $0x10] sm:$0xff] %vm179, %v173
    %183 = vst.msk [vmem:[%s3 + $0x18] sm:$0xff] %vm179, %v174
    %184 = vst.msk [vmem:[%s3 + $0x20] sm:$0xff] %vm179, %v175
    %185 = vst.msk [vmem:[%s3 + $0x28] sm:$0xff] %vm179, %v176
    %186 = vst.msk [vmem:[%s3 + $0x30] sm:$0xff] %vm179, %v177
    %187 = vst.msk [vmem:[%s3 + $0x38] sm:$0xff] %vm179, %v178
    %v188 = vld [vmem:[#allocation3] sm:$0xff]
    %v189 = vld [vmem:[#allocation3 + $0x8] sm:$0xff]
    %v190 = vld [vmem:[#allocation3 + $0x10] sm:$0xff]
    %v191 = vld [vmem:[#allocation3 + $0x18] sm:$0xff]
    %v192 = vld [vmem:[#allocation3 + $0x20] sm:$0xff]
    %v193 = vld [vmem:[#allocation3 + $0x28] sm:$0xff]
    %v194 = vld [vmem:[#allocation3 + $0x30] sm:$0xff]
    %v195 = vld [vmem:[#allocation3 + $0x38] sm:$0xff]
    %196 = vrot.lane.b32.xlu0 %v43, 64
    %v197 = vpop.permute.xlu0 %196
    %v199 = vmul.f32 %v188, %v197
    %v200 = vmul.f32 %v189, %v197
    %v201 = vmul.f32 %v190, %v197
    %v202 = vmul.f32 %v191, %v197
    %v203 = vmul.f32 %v192, %v197
    %v204 = vmul.f32 %v193, %v197
    %v205 = vmul.f32 %v194, %v197
    %v206 = vmul.f32 %v195, %v197
    %215 = vrot.lane.b32.xlu0 %v199, 64
    %v216 = vpop.permute.xlu0 %215
    %217 = vrot.lane.b32.xlu0 %v200, 64
    %v218 = vpop.permute.xlu0 %217
    %219 = vrot.lane.b32.xlu0 %v201, 64
    %v220 = vpop.permute.xlu0 %219
    %221 = vrot.lane.b32.xlu0 %v202, 64
    %v222 = vpop.permute.xlu0 %221
    %223 = vrot.lane.b32.xlu0 %v203, 64
    %v224 = vpop.permute.xlu0 %223
    %225 = vrot.lane.b32.xlu0 %v204, 64
    %v226 = vpop.permute.xlu0 %225
    %227 = vrot.lane.b32.xlu0 %v205, 64
    %v228 = vpop.permute.xlu0 %227
    %229 = vrot.lane.b32.xlu0 %v206, 64
    %v230 = vpop.permute.xlu0 %229
    %v239 = vsel %vm53, %v216, 0.0
    %240 = vadd.xlane.f32.xlu0 %v239
    %v241 = vpop.xlane.xlu0 %240
    %v242 = vsel %vm53, %v218, 0.0
    %243 = vadd.xlane.f32.xlu0 %v242
    %v244 = vpop.xlane.xlu0 %243
    %v245 = vsel %vm53, %v220, 0.0
    %246 = vadd.xlane.f32.xlu0 %v245
    %v247 = vpop.xlane.xlu0 %246
    %v248 = vsel %vm53, %v222, 0.0
    %249 = vadd.xlane.f32.xlu0 %v248
    %v250 = vpop.xlane.xlu0 %249
    %v251 = vsel %vm53, %v224, 0.0
    %252 = vadd.xlane.f32.xlu0 %v251
    %v253 = vpop.xlane.xlu0 %252
    %v254 = vsel %vm53, %v226, 0.0
    %255 = vadd.xlane.f32.xlu0 %v254
    %v256 = vpop.xlane.xlu0 %255
    %v257 = vsel %vm53, %v228, 0.0
    %258 = vadd.xlane.f32.xlu0 %v257
    %v259 = vpop.xlane.xlu0 %258
    %v260 = vsel %vm53, %v230, 0.0
    %261 = vadd.xlane.f32.xlu0 %v260
    %v262 = vpop.xlane.xlu0 %261
    %v263 = vadd.f32 %v241, %v78
    %v264 = vadd.f32 %v244, %v78
    %v265 = vadd.f32 %v247, %v78
    %v266 = vadd.f32 %v250, %v78
    %v267 = vadd.f32 %v253, %v78
    %v268 = vadd.f32 %v256, %v78
    %v269 = vadd.f32 %v259, %v78
    %v270 = vadd.f32 %v262, %v78
    %vm271 = vcmask 23568
    %272 = vst.msk [vmem:[%s3] sm:$0xff] %vm271, %v263
    %273 = vst.msk [vmem:[%s3 + $0x8] sm:$0xff] %vm271, %v264
    %274 = vst.msk [vmem:[%s3 + $0x10] sm:$0xff] %vm271, %v265
    %275 = vst.msk [vmem:[%s3 + $0x18] sm:$0xff] %vm271, %v266
    %276 = vst.msk [vmem:[%s3 + $0x20] sm:$0xff] %vm271, %v267
    %277 = vst.msk [vmem:[%s3 + $0x28] sm:$0xff] %vm271, %v268
    %278 = vst.msk [vmem:[%s3 + $0x30] sm:$0xff] %vm271, %v269
    %279 = vst.msk [vmem:[%s3 + $0x38] sm:$0xff] %vm271, %v270
    %v280 = vld [vmem:[#allocation3] sm:$0xff]
    %v281 = vld [vmem:[#allocation3 + $0x8] sm:$0xff]
    %v282 = vld [vmem:[#allocation3 + $0x10] sm:$0xff]
    %v283 = vld [vmem:[#allocation3 + $0x18] sm:$0xff]
    %v284 = vld [vmem:[#allocation3 + $0x20] sm:$0xff]
    %v285 = vld [vmem:[#allocation3 + $0x28] sm:$0xff]
    %v286 = vld [vmem:[#allocation3 + $0x30] sm:$0xff]
    %v287 = vld [vmem:[#allocation3 + $0x38] sm:$0xff]
    %288 = vrot.lane.b32.xlu0 %v43, 96
    %v289 = vpop.permute.xlu0 %288
    %v291 = vmul.f32 %v280, %v289
    %v292 = vmul.f32 %v281, %v289
    %v293 = vmul.f32 %v282, %v289
    %v294 = vmul.f32 %v283, %v289
    %v295 = vmul.f32 %v284, %v289
    %v296 = vmul.f32 %v285, %v289
    %v297 = vmul.f32 %v286, %v289
    %v298 = vmul.f32 %v287, %v289
    %307 = vrot.lane.b32.xlu0 %v291, 32
    %v308 = vpop.permute.xlu0 %307
    %309 = vrot.lane.b32.xlu0 %v292, 32
    %v310 = vpop.permute.xlu0 %309
    %311 = vrot.lane.b32.xlu0 %v293, 32
    %v312 = vpop.permute.xlu0 %311
    %313 = vrot.lane.b32.xlu0 %v294, 32
    %v314 = vpop.permute.xlu0 %313
    %315 = vrot.lane.b32.xlu0 %v295, 32
    %v316 = vpop.permute.xlu0 %315
    %317 = vrot.lane.b32.xlu0 %v296, 32
    %v318 = vpop.permute.xlu0 %317
    %319 = vrot.lane.b32.xlu0 %v297, 32
    %v320 = vpop.permute.xlu0 %319
    %321 = vrot.lane.b32.xlu0 %v298, 32
    %v322 = vpop.permute.xlu0 %321
    %v331 = vsel %vm53, %v308, 0.0
    %332 = vadd.xlane.f32.xlu0 %v331
    %v333 = vpop.xlane.xlu0 %332
    %v334 = vsel %vm53, %v310, 0.0
    %335 = vadd.xlane.f32.xlu0 %v334
    %v336 = vpop.xlane.xlu0 %335
    %v337 = vsel %vm53, %v312, 0.0
    %338 = vadd.xlane.f32.xlu0 %v337
    %v339 = vpop.xlane.xlu0 %338
    %v340 = vsel %vm53, %v314, 0.0
    %341 = vadd.xlane.f32.xlu0 %v340
    %v342 = vpop.xlane.xlu0 %341
    %v343 = vsel %vm53, %v316, 0.0
    %344 = vadd.xlane.f32.xlu0 %v343
    %v345 = vpop.xlane.xlu0 %344
    %v346 = vsel %vm53, %v318, 0.0
    %347 = vadd.xlane.f32.xlu0 %v346
    %v348 = vpop.xlane.xlu0 %347
    %v349 = vsel %vm53, %v320, 0.0
    %350 = vadd.xlane.f32.xlu0 %v349
    %v351 = vpop.xlane.xlu0 %350
    %v352 = vsel %vm53, %v322, 0.0
    %353 = vadd.xlane.f32.xlu0 %v352
    %v354 = vpop.xlane.xlu0 %353
    %v355 = vadd.f32 %v333, %v78
    %v356 = vadd.f32 %v336, %v78
    %v357 = vadd.f32 %v339, %v78
    %v358 = vadd.f32 %v342, %v78
    %v359 = vadd.f32 %v345, %v78
    %v360 = vadd.f32 %v348, %v78
    %v361 = vadd.f32 %v351, %v78
    %v362 = vadd.f32 %v354, %v78
    %vm363 = vcmask 31768
    %364 = vst.msk [vmem:[%s3] sm:$0xff] %vm363, %v355
    %365 = vst.msk [vmem:[%s3 + $0x8] sm:$0xff] %vm363, %v356
    %366 = vst.msk [vmem:[%s3 + $0x10] sm:$0xff] %vm363, %v357
    %367 = vst.msk [vmem:[%s3 + $0x18] sm:$0xff] %vm363, %v358
    %368 = vst.msk [vmem:[%s3 + $0x20] sm:$0xff] %vm363, %v359
    %369 = vst.msk [vmem:[%s3 + $0x28] sm:$0xff] %vm363, %v360
    %370 = vst.msk [vmem:[%s3 + $0x30] sm:$0xff] %vm363, %v361
    %371 = vst.msk [vmem:[%s3 + $0x38] sm:$0xff] %vm363, %v362
    // Predicated region
    $region18: #{tpu_custom_call.1} parent=1 // pred_check
      _
    $region19: #{tpu_custom_call.1} parent=1 // pred_check_branch
      %373 = sbr.rel (0) target = $region21
    $region20: #{tpu_custom_call.1} parent=1 // pred_region
      _
    $region21: #{tpu_custom_call.1} parent=1 // pred_fallthru
      _
    // Predicated region
    $region22: #{tpu_custom_call.1} parent=1 // pred_check
      _
    $region23: #{tpu_custom_call.1} parent=1 // pred_check_branch
      %375 = sbr.rel (0) target = $region25
    $region24: #{tpu_custom_call.1} parent=1 // pred_region
      _
    $region25: #{tpu_custom_call.1} parent=1 // pred_fallthru
      _
    %376 = vsyncpa [#allocation4], 1

</llo_original>
